<compile_context>
chip_gen: v6e
topology: v6e:2x2x1
jax: 0.10.0
libtpu: 0.0.40
codegen_flags: <defaults>
</compile_context>

<pallas_src>
import functools

import jax
import jax.numpy as jnp
from jax.experimental import pallas as pl
from jax.experimental.pallas import tpu as pltpu


def _casrel_head_kernel(
    x_ref,       # (tB, tS, H)    bf16  BERT last hidden state tile
    attn_ref,    # (tB, tS, 1)    f32   attention mask (0/1)
    bias_ref,    # (tB, 1, Ntot)  f32   per-batch fused bias (object corr folded in)
    w_ref,       # (H, Ntot)      bf16  fused weights [w_ss|w_se|w_os|w_oe]
    ss_ref,      # (tB, tS, 1)    bf16
    se_ref,      # (tB, tS, 1)    bf16
    os_ref,      # (tB, tS, R)    bf16
    oe_ref,      # (tB, tS, R)    bf16
    *, relation_cnt,
):
    r = relation_cnt
    w = w_ref[...]                                   # (H, Ntot), read once
    for b in range(x_ref.shape[0]):                  # static unroll over tB batch rows
        # One MXU matmul (f32 accumulation) for all four classifiers; the
        # subject-repr contribution to the object columns is already inside bias.
        logits = jnp.dot(x_ref[b], w, preferred_element_type=jnp.float32) + bias_ref[b]
        probs = (jax.nn.sigmoid(logits) * attn_ref[b]).astype(ss_ref.dtype)  # (tS, Ntot)
        ss_ref[b] = probs[:, 0:1]
        se_ref[b] = probs[:, 1:2]
        os_ref[b] = probs[:, 2:2 + r]
        oe_ref[b] = probs[:, 2 + r:2 + 2 * r]


def _choose_tiles(B, S, H, bytes_per_elem=2, buf_budget=4 << 20):
    # Largest sequence tile dividing S (bigger tiles amortize the ~0.35 us/step
    # pipeline overhead, which matters most on v7x's faster HBM).
    tS = S
    for cand in (2048, 1024, 512, 256, 128):
        if S % cand == 0:
            tS = cand
            break
    tB = 1
    if S // tS == 1 and tS % 8 == 0:
        # Short sequences: block several batch rows per step, but keep >= 2 grid
        # steps (feeds both v7x TensorCores) and stay within a per-buffer VMEM budget.
        for cand in (8, 4, 2):
            if B % cand == 0 and B // cand >= 2 and cand * tS * H * bytes_per_elem <= buf_budget:
                tB = cand
                break
    if (B // tB) * (S // tS) == 1 and tS % 16 == 0:
        # Degenerate 1-step grid (B == 1, short S): 2-way sequence split.
        tS //= 2
    return tB, tS


def _subject_repr(x_bf, gt_start, gt_end, one_hot):
    """(B, H) f32 subject representation 0.5*(gt_start + gt_end) @ x."""
    f32, bf16 = jnp.float32, jnp.bfloat16
    B = x_bf.shape[0]
    if one_hot:
        # One-hot (or all-zero) labels: gather 2 rows per batch instead of
        # re-reading the whole (B, S, H) activation tensor.
        rows = jnp.arange(B)
        idx_s = jnp.argmax(gt_start, axis=1)
        idx_e = jnp.argmax(gt_end, axis=1)
        w_s = jnp.sum(gt_start, axis=1, keepdims=True).astype(f32)   # 1 if one-hot, 0 if empty
        w_e = jnp.sum(gt_end, axis=1, keepdims=True).astype(f32)
        srep = 0.5 * (x_bf[rows, idx_s].astype(f32) * w_s
                      + x_bf[rows, idx_e].astype(f32) * w_e)
    else:
        # Soft / multi-hot labels: bf16 operands, f32 accumulation (no f32 copy of x).
        gt_avg = (0.5 * (gt_start.astype(f32) + gt_end.astype(f32))).astype(bf16)
        srep = jnp.einsum("bs,bsh->bh", gt_avg, x_bf, preferred_element_type=f32)
    return srep


@functools.partial(jax.jit, static_argnames=("subjects_one_hot",))
def casrel_forward(bert_embed, attention_mask, subject_gt_start, subject_gt_end,
                   params, *, subjects_one_hot=True):
    """Training-mode CASREL head forward. Returns the same dict the PyTorch module returns."""
    f32, bf16 = jnp.float32, jnp.bfloat16
    B, S, H = bert_embed.shape
    R = params["w_os"].shape[1]
    n_tot = 2 + 2 * R            # [ss | se | os(R) | oe(R)] -- written at true width

    x_bf = bert_embed.astype(bf16)
    attn_f = attention_mask.astype(f32)[:, :, None]                       # (B, S, 1)

    # Fused classifier weights / biases (no 128-padding: the output is stored at
    # its true width, so padding would only add HBM writeback + re-read).
    w_all = jnp.concatenate(
        [params["w_ss"], params["w_se"], params["w_os"], params["w_oe"]], axis=1
    ).astype(bf16)                                                         # (H, Ntot)
    b_all = jnp.concatenate(
        [params["b_ss"], params["b_se"], params["b_os"], params["b_oe"]], axis=1
    ).astype(f32)                                                          # (1, Ntot)

    # Subject representation + object-column correction folded into a per-batch bias:
    #   (x + srep) @ W_obj + b_obj == x @ W_obj + (srep @ W_obj + b_obj)
    srep = _subject_repr(x_bf, subject_gt_start, subject_gt_end, subjects_one_hot)  # (B,H) f32
    corr = jnp.einsum("bh,hn->bn", srep.astype(bf16), w_all,
                      preferred_element_type=f32)                          # (B, Ntot)
    obj_cols = (jnp.arange(n_tot) >= 2).astype(f32)[None, :]
    bias_b = (b_all + corr * obj_cols)[:, None, :]                         # (B, 1, Ntot)

    tB, tS = _choose_tiles(B, S, H)
    grid = (B // tB, S // tS)

    kernel = functools.partial(_casrel_head_kernel, relation_cnt=R)
    out_dt = bf16   # sigmoid outputs in [0,1]; bf16 halves kernel HBM writeback

    ss, se, osr, oer = pl.pallas_call(
        kernel,
        out_shape=(
            jax.ShapeDtypeStruct((B, S, 1), out_dt),
            jax.ShapeDtypeStruct((B, S, 1), out_dt),
            jax.ShapeDtypeStruct((B, S, R), out_dt),
            jax.ShapeDtypeStruct((B, S, R), out_dt),
        ),
        grid_spec=pltpu.PrefetchScalarGridSpec(
            num_scalar_prefetch=0,
            grid=grid,
            in_specs=[
                pl.BlockSpec((tB, tS, H), lambda b, s: (b, s, 0)),       # activations tile
                pl.BlockSpec((tB, tS, 1), lambda b, s: (b, s, 0)),       # attention mask tile
                pl.BlockSpec((tB, 1, n_tot), lambda b, s: (b, 0, 0)),    # per-batch fused bias
                pl.BlockSpec((H, n_tot), lambda b, s: (0, 0)),           # fused weights
            ],
            out_specs=[
                pl.BlockSpec((tB, tS, 1), lambda b, s: (b, s, 0)),
                pl.BlockSpec((tB, tS, 1), lambda b, s: (b, s, 0)),
                pl.BlockSpec((tB, tS, R), lambda b, s: (b, s, 0)),
                pl.BlockSpec((tB, tS, R), lambda b, s: (b, s, 0)),
            ],
        ),
        compiler_params=pltpu.CompilerParams(
            dimension_semantics=("parallel", "parallel")),
    )(x_bf, attn_f, bias_b, w_all)

    # ro_mask: pure 0/1 broadcast of the attention mask; kept out of the
    # memory-bound kernel and emitted in bf16 (0/1 exact) to halve its HBM
    # writeback.  Consumers that only need masking should prefer subject_mask.
    rom = jnp.broadcast_to(attention_mask.astype(bf16)[:, :, None], (B, S, R))

    return {
        "subject_start_result": ss,
        "subject_end_result": se,
        "object_start_result": osr,
        "object_end_result": oer,
        "subject_mask": attention_mask,
        "ro_mask": rom,
    }


def _xavier_uniform(key, fan_in, fan_out):
    # matches torch.nn.init.xavier_uniform_ on a (fan_out, fan_in) weight;
    # stored transposed as (fan_in, fan_out) for x @ W.
    bound = (6.0 / (fan_in + fan_out)) ** 0.5
    return jax.random.uniform(key, (fan_in, fan_out), jnp.float32, -bound, bound)


def init_params(key, hidden, relation_cnt):
    k1, k2, k3, k4 = jax.random.split(key, 4)
    return {
        "w_ss": _xavier_uniform(k1, hidden, 1),
        "b_ss": jnp.zeros((1, 1), jnp.float32),
        "w_se": _xavier_uniform(k2, hidden, 1),
        "b_se": jnp.zeros((1, 1), jnp.float32),
        "w_os": _xavier_uniform(k3, hidden, relation_cnt),
        "b_os": jnp.zeros((1, relation_cnt), jnp.float32),
        "w_oe": _xavier_uniform(k4, hidden, relation_cnt),
        "b_oe": jnp.zeros((1, relation_cnt), jnp.float32),
    }


def _reference(bert_embed, attention_mask, gt_start, gt_end, params):
    """Plain-JAX reference mirroring the PyTorch forward (training branch),
    with the same bf16 rounding of activations/weights the kernel uses."""
    f32, bf16 = jnp.float32, jnp.bfloat16
    rnd = lambda a: a.astype(bf16).astype(f32)
    x = rnd(bert_embed)
    attn = attention_mask.astype(f32)[:, :, None]
    ss = jax.nn.sigmoid(x @ rnd(params["w_ss"]) + params["b_ss"]) * attn
    se = jax.nn.sigmoid(x @ rnd(params["w_se"]) + params["b_se"]) * attn
    gt_avg = 0.5 * (gt_start.astype(f32) + gt_end.astype(f32))
    srep = jnp.einsum("bs,bsh->bh", gt_avg, x)[:, None, :]
    embed = x + srep
    osr = jax.nn.sigmoid(embed @ rnd(params["w_os"]) + params["b_os"]) * attn
    oer = jax.nn.sigmoid(embed @ rnd(params["w_oe"]) + params["b_oe"]) * attn
    rom = jnp.broadcast_to(attn, osr.shape)
    return ss, se, osr, oer, rom


if __name__ == "__main__":
    B, S, H, R = 2, 8, 32, 3

    key = jax.random.PRNGKey(0)
    k_embed, k_params = jax.random.split(key, 2)

    bert_embed = jax.random.normal(k_embed, (B, S, H), jnp.float32)
    # attention mask: first few tokens valid
    lengths = jnp.array([6, 4], jnp.int32)
    attention_mask = (jnp.arange(S)[None, :] < lengths[:, None]).astype(jnp.int32)
    # synthetic subject ground-truth start/end one-hot vectors
    subject_gt_start = jnp.zeros((B, S), jnp.float32).at[0, 1].set(1.0).at[1, 0].set(1.0)
    subject_gt_end = jnp.zeros((B, S), jnp.float32).at[0, 3].set(1.0).at[1, 2].set(1.0)

    params = init_params(k_params, H, R)

    out = casrel_forward(bert_embed, attention_mask, subject_gt_start, subject_gt_end, params)
    jax.block_until_ready(out)

    ref = _reference(bert_embed, attention_mask, subject_gt_start, subject_gt_end, params)
    names = ("subject_start_result", "subject_end_result",
             "object_start_result", "object_end_result", "ro_mask")
    for name, want in zip(names, ref):
        got = out[name].astype(jnp.float32)
        assert got.shape == want.shape, f"shape mismatch vs reference: {name}"
        # bf16 outputs: ~4e-3 quantization near 1.0 plus matmul-order differences.
        assert jnp.allclose(got, want, atol=8e-3, rtol=8e-3), f"mismatch vs reference: {name}"

    print("KERNEL_OK")
</pallas_src>

<mosaic_0001>
module attributes {stable_mosaic.version = 11 : i64} {
  func.func @_casrel_head_kernel(%arg0: i32, %arg1: i32, %arg2: memref<1x8x32xbf16, #tpu.memory_space<vmem>>, %arg3: memref<1x8x1xf32, #tpu.memory_space<vmem>>, %arg4: memref<1x1x8xf32, #tpu.memory_space<vmem>>, %arg5: memref<32x8xbf16, #tpu.memory_space<vmem>>, %arg6: memref<1x8x1xbf16, #tpu.memory_space<vmem>>, %arg7: memref<1x8x1xbf16, #tpu.memory_space<vmem>>, %arg8: memref<1x8x3xbf16, #tpu.memory_space<vmem>>, %arg9: memref<1x8x3xbf16, #tpu.memory_space<vmem>>) attributes {dimension_semantics = [#tpu.dimension_semantics<parallel>, #tpu.dimension_semantics<parallel>], iteration_bounds = array<i64: 2, 1>, scalar_prefetch = 0 : i64, scratch_operands = 0 : i64, tpu.core_type = #tpu.core_type<tc>, window_params = [{transform_indices = @transform_0, window_bounds = array<i64: 1, 8, 32>}, {transform_indices = @transform_1, window_bounds = array<i64: 1, 8, 1>}, {transform_indices = @transform_2, window_bounds = array<i64: 1, 1, 8>}, {pipeline_mode = #tpu.pipeline_mode<synchronous>, transform_indices = @transform_3, window_bounds = array<i64: 32, 8>}, {transform_indices = @transform_4, window_bounds = array<i64: 1, 8, 1>}, {transform_indices = @transform_5, window_bounds = array<i64: 1, 8, 1>}, {transform_indices = @transform_6, window_bounds = array<i64: 1, 8, 3>}, {transform_indices = @transform_7, window_bounds = array<i64: 1, 8, 3>}]} {
    %c0 = arith.constant 0 : index
    %c0_0 = arith.constant 0 : index
    %0 = vector.load %arg5[%c0, %c0_0] : memref<32x8xbf16, #tpu.memory_space<vmem>>, vector<32x8xbf16>
    %c0_1 = arith.constant 0 : index
    %c0_2 = arith.constant 0 : index
    %c0_3 = arith.constant 0 : index
    %1 = vector.load %arg2[%c0_1, %c0_2, %c0_3] : memref<1x8x32xbf16, #tpu.memory_space<vmem>>, vector<1x8x32xbf16>
    %2 = vector.shape_cast %1 : vector<1x8x32xbf16> to vector<8x32xbf16>
    %cst = arith.constant dense<0.000000e+00> : vector<8x8xf32>
    %3 = tpu.matmul %2, %0, %cst {dimension_numbers = #tpu.dot_dimension_numbers<[1], [0], [0], [1], [0, 0, 1, 1], [], []>} : vector<8x32xbf16>, vector<32x8xbf16>, vector<8x8xf32> -> vector<8x8xf32>
    %c0_4 = arith.constant 0 : index
    %c0_5 = arith.constant 0 : index
    %c0_6 = arith.constant 0 : index
    %4 = vector.load %arg4[%c0_4, %c0_5, %c0_6] : memref<1x1x8xf32, #tpu.memory_space<vmem>>, vector<1x1x8xf32>
    %5 = vector.shape_cast %4 : vector<1x1x8xf32> to vector<1x8xf32>
    %6 = vector.broadcast %5 : vector<1x8xf32> to vector<8x8xf32>
    %7 = arith.addf %3, %6 : vector<8x8xf32>
    %8 = arith.negf %7 : vector<8x8xf32>
    %9 = math.exp %8 : vector<8x8xf32>
    %cst_7 = arith.constant 1.000000e+00 : f32
    %10 = vector.broadcast %cst_7 : f32 to vector<8x8xf32>
    %11 = arith.addf %10, %9 : vector<8x8xf32>
    %12 = arith.divf %10, %11 : vector<8x8xf32>
    %c0_8 = arith.constant 0 : index
    %c0_9 = arith.constant 0 : index
    %c0_10 = arith.constant 0 : index
    %13 = vector.load %arg3[%c0_8, %c0_9, %c0_10] : memref<1x8x1xf32, #tpu.memory_space<vmem>>, vector<1x8x1xf32>
    %14 = vector.shape_cast %13 : vector<1x8x1xf32> to vector<8x1xf32>
    %15 = vector.broadcast %14 : vector<8x1xf32> to vector<8x8xf32>
    %16 = arith.mulf %12, %15 : vector<8x8xf32>
    %17 = arith.truncf %16 : vector<8x8xf32> to vector<8x8xbf16>
    %18 = vector.extract_strided_slice %17 {offsets = [0, 0], sizes = [8, 1], strides = [1, 1]} : vector<8x8xbf16> to vector<8x1xbf16>
    %c0_11 = arith.constant 0 : index
    %c0_12 = arith.constant 0 : index
    %c0_13 = arith.constant 0 : index
    %19 = vector.load %arg6[%c0_11, %c0_12, %c0_13] : memref<1x8x1xbf16, #tpu.memory_space<vmem>>, vector<1x8x1xbf16>
    %20 = vector.shape_cast %19 : vector<1x8x1xbf16> to vector<8x1xbf16>
    %21 = vector.shape_cast %18 : vector<8x1xbf16> to vector<1x8x1xbf16>
    tpu.vector_store %arg6[%c0_11, %c0_12, %c0_13], %21 {strides = array<i32>} : memref<1x8x1xbf16, #tpu.memory_space<vmem>>, vector<1x8x1xbf16>,
    %22 = vector.extract_strided_slice %17 {offsets = [0, 1], sizes = [8, 1], strides = [1, 1]} : vector<8x8xbf16> to vector<8x1xbf16>
    %c0_14 = arith.constant 0 : index
    %c0_15 = arith.constant 0 : index
    %c0_16 = arith.constant 0 : index
    %23 = vector.load %arg7[%c0_14, %c0_15, %c0_16] : memref<1x8x1xbf16, #tpu.memory_space<vmem>>, vector<1x8x1xbf16>
    %24 = vector.shape_cast %23 : vector<1x8x1xbf16> to vector<8x1xbf16>
    %25 = vector.shape_cast %22 : vector<8x1xbf16> to vector<1x8x1xbf16>
    tpu.vector_store %arg7[%c0_14, %c0_15, %c0_16], %25 {strides = array<i32>} : memref<1x8x1xbf16, #tpu.memory_space<vmem>>, vector<1x8x1xbf16>,
    %26 = vector.extract_strided_slice %17 {offsets = [0, 2], sizes = [8, 3], strides = [1, 1]} : vector<8x8xbf16> to vector<8x3xbf16>
    %c0_17 = arith.constant 0 : index
    %c0_18 = arith.constant 0 : index
    %c0_19 = arith.constant 0 : index
    %27 = vector.load %arg8[%c0_17, %c0_18, %c0_19] : memref<1x8x3xbf16, #tpu.memory_space<vmem>>, vector<1x8x3xbf16>
    %28 = vector.shape_cast %27 : vector<1x8x3xbf16> to vector<8x3xbf16>
    %29 = vector.shape_cast %26 : vector<8x3xbf16> to vector<1x8x3xbf16>
    tpu.vector_store %arg8[%c0_17, %c0_18, %c0_19], %29 {strides = array<i32>} : memref<1x8x3xbf16, #tpu.memory_space<vmem>>, vector<1x8x3xbf16>,
    %30 = vector.extract_strided_slice %17 {offsets = [0, 5], sizes = [8, 3], strides = [1, 1]} : vector<8x8xbf16> to vector<8x3xbf16>
    %c0_20 = arith.constant 0 : index
    %c0_21 = arith.constant 0 : index
    %c0_22 = arith.constant 0 : index
    %31 = vector.load %arg9[%c0_20, %c0_21, %c0_22] : memref<1x8x3xbf16, #tpu.memory_space<vmem>>, vector<1x8x3xbf16>
    %32 = vector.shape_cast %31 : vector<1x8x3xbf16> to vector<8x3xbf16>
    %33 = vector.shape_cast %30 : vector<8x3xbf16> to vector<1x8x3xbf16>
    tpu.vector_store %arg9[%c0_20, %c0_21, %c0_22], %33 {strides = array<i32>} : memref<1x8x3xbf16, #tpu.memory_space<vmem>>, vector<1x8x3xbf16>,
    return
  }
  func.func @transform_0(%arg0: i32, %arg1: i32) -> (i32, i32, i32) {
    %c0_i32 = arith.constant 0 : i32
    %c0_i32_0 = arith.constant 0 : i32
    return %arg0, %arg1, %c0_i32 : i32, i32, i32
  }
  func.func @transform_1(%arg0: i32, %arg1: i32) -> (i32, i32, i32) {
    %c0_i32 = arith.constant 0 : i32
    %c0_i32_0 = arith.constant 0 : i32
    return %arg0, %arg1, %c0_i32 : i32, i32, i32
  }
  func.func @transform_2(%arg0: i32, %arg1: i32) -> (i32, i32, i32) {
    %c0_i32 = arith.constant 0 : i32
    %c0_i32_0 = arith.constant 0 : i32
    %c0_i32_1 = arith.constant 0 : i32
    return %arg0, %c0_i32, %c0_i32_0 : i32, i32, i32
  }
  func.func @transform_3(%arg0: i32, %arg1: i32) -> (i32, i32) {
    %c0_i32 = arith.constant 0 : i32
    %c0_i32_0 = arith.constant 0 : i32
    %c0_i32_1 = arith.constant 0 : i32
    return %c0_i32, %c0_i32_0 : i32, i32
  }
  func.func @transform_4(%arg0: i32, %arg1: i32) -> (i32, i32, i32) {
    %c0_i32 = arith.constant 0 : i32
    %c0_i32_0 = arith.constant 0 : i32
    return %arg0, %arg1, %c0_i32 : i32, i32, i32
  }
  func.func @transform_5(%arg0: i32, %arg1: i32) -> (i32, i32, i32) {
    %c0_i32 = arith.constant 0 : i32
    %c0_i32_0 = arith.constant 0 : i32
    return %arg0, %arg1, %c0_i32 : i32, i32, i32
  }
  func.func @transform_6(%arg0: i32, %arg1: i32) -> (i32, i32, i32) {
    %c0_i32 = arith.constant 0 : i32
    %c0_i32_0 = arith.constant 0 : i32
    return %arg0, %arg1, %c0_i32 : i32, i32, i32
  }
  func.func @transform_7(%arg0: i32, %arg1: i32) -> (i32, i32, i32) {
    %c0_i32 = arith.constant 0 : i32
    %c0_i32_0 = arith.constant 0 : i32
    return %arg0, %arg1, %c0_i32 : i32, i32, i32
  }
}

</mosaic_0001>

<llo_original>
// kernel: casrel_forward.1
$region0: #{casrel_forward.1}
  #allocation0 [shape = 'u32[]', space=smem, size = 0x4, offset = 0x4, fixed_abs, tag = 'smem constant byte address 0x4 - core index']
  #allocation1 [shape = 'u32[144,128]{1,0:T(1,128)}', space=vmem, size = 0x12000, scoped, tag = 'internal scratch']
  %s0 = inlined_call_operand.vmem [shape: bf16[2,8,32], index: 0, kind: input, shape index: {}]
  %s1 = inlined_call_operand.vmem [shape: f32[2,8,1], index: 1, kind: input, shape index: {}]
  %s2 = inlined_call_operand.vmem [shape: f32[2,1,8], index: 2, kind: input, shape index: {}]
  %s3 = inlined_call_operand.vmem [shape: bf16[32,8], index: 3, kind: input, shape index: {}]
  %s4 = inlined_call_operand.vmem [shape: bf16[2,8,1], index: 4, kind: output, shape index: {0}]
  %s5 = inlined_call_operand.vmem [shape: bf16[2,8,1], index: 5, kind: output, shape index: {1}]
  %s6 = inlined_call_operand.vmem [shape: bf16[2,8,3], index: 6, kind: output, shape index: {2}]
  %s7 = inlined_call_operand.vmem [shape: bf16[2,8,3], index: 7, kind: output, shape index: {3}]
  %8 = xla_tuple %s4, %s5, %s6, %s7
  %s9 = sld [smem:[#allocation0]]
  $region73: #{casrel_forward.1} parent=0
    _
  %s11 = ssub.s32 1, %s9
  %s12 = scalar_select 0, %s11, %s9
  loop: start=0, step=1, limit=4
  $region2: #{casrel_forward.1} parent=0 // loop_pre_header
    _
  $region3: #{casrel_forward.1} parent=0 // loop_header
    %s14 = sphi 0, %s18
    %p15 = scmp.ge.s32.totalorder %s14, 4
    %s21 = sphi 0, %s33
    %s22 = sphi 0, %s29
    %s23 = sphi 0, %s21
    %s24 = sphi 0, %s22
    %s25 = sphi 0, %s23
    %s26 = sphi 0, %s24
    %s38 = sphi 0, %s40
    %s41 = sphi 0, %s38
    %s42 = sphi 0, %s41
    %s58 = sphi 0, %s42
    %s66 = sphi 0, %s68
    %s69 = sphi 0, %s66
    %s70 = sphi 0, %s69
    %s86 = sphi 0, %s70
    %s92 = sphi 0, %s94
    %s95 = sphi 0, %s92
    %s96 = sphi 0, %s95
    %s112 = sphi 0, %s96
    %s116 = sphi 0, %s116
    %s118 = sphi 0, %s116
    %s119 = sphi 0, %s118
    %s133 = sphi 0, %s119
    %s141 = sphi 0, %s143
    %s144 = sphi 0, %s141
    %s145 = sphi 0, %s144
    %s161 = sphi 0, %s145
    %s169 = sphi 0, %s171
    %s172 = sphi 0, %s169
    %s173 = sphi 0, %s172
    %s189 = sphi 0, %s173
    %s197 = sphi 0, %s199
    %s200 = sphi 0, %s197
    %s201 = sphi 0, %s200
    %s217 = sphi 0, %s201
    %s225 = sphi 0, %s227
    %s228 = sphi 0, %s225
    %s229 = sphi 0, %s228
    %s245 = sphi 0, %s229
  $region4: #{casrel_forward.1} parent=0 // loop_header_branch
    %17 = sbr.rel (%p15) target = $region8
  $region5: #{casrel_forward.1} parent=0 // loop_body
    %s19 = ssub.s32 %s14, 1
    %s20 = ssub.s32 %s14, 2
    %s27 = sadd.s32 1, %s22
    %p28 = scmp.ge.s32.totalorder %s27, 1
    %s29 = scalar_select %p28, 0, %s27
    %s30 = sadd.s32 1, %s21
    %s31 = scalar_select %p28, %s30, %s21
    %p32 = scmp.ge.s32.totalorder %s31, 2
    %s33 = scalar_select %p32, 0, %s31
    %s34 = ssub.s32 %s21, %s33
    %s35 = ssub.s32 %s22, %s29
    %s36 = sor.u32 %s34, %s35
    %p37 = scmp.eq.s32.totalorder %s36, 0
    %s39 = sadd.s32 %s38, 1
    %s40 = scalar_select %p37, %s38, %s39
    %p43 = pneg %p37
    %p44 = scmp.eq.s32.totalorder %s14, 1
    %p45 = por %p43, %p44
    %p46 = scmp.ne.s32.totalorder %s38, %s41
    %p47 = scmp.eq.s32.totalorder %s14, 0
    %p48 = por %p46, %p47
    %p49 = scmp.ne.s32.totalorder %s38, %s41
    %p50 = scmp.eq.s32.totalorder %s19, 1
    %p51 = por %p49, %p50
    %p52 = scmp.ne.s32.totalorder %s41, %s42
    %p53 = scmp.eq.s32.totalorder %s19, 0
    %p54 = por %p52, %p53
    %p55 = scmp.ne.s32.totalorder %s41, %s42
    %p56 = scmp.eq.s32.totalorder %s20, 1
    %p57 = por %p55, %p56
    %p59 = scmp.ne.s32.totalorder %s42, %s58
    %p60 = scmp.eq.s32.totalorder %s20, 0
    %p61 = por %p59, %p60
    %s62 = ssub.s32 %s21, %s33
    %s63 = ssub.s32 %s22, %s29
    %s64 = sor.u32 %s62, %s63
    %p65 = scmp.eq.s32.totalorder %s64, 0
    %s67 = sadd.s32 %s66, 1
    %s68 = scalar_select %p65, %s66, %s67
    %p71 = pneg %p65
    %p72 = scmp.eq.s32.totalorder %s14, 1
    %p73 = por %p71, %p72
    %p74 = scmp.ne.s32.totalorder %s66, %s69
    %p75 = scmp.eq.s32.totalorder %s14, 0
    %p76 = por %p74, %p75
    %p77 = scmp.ne.s32.totalorder %s66, %s69
    %p78 = scmp.eq.s32.totalorder %s19, 1
    %p79 = por %p77, %p78
    %p80 = scmp.ne.s32.totalorder %s69, %s70
    %p81 = scmp.eq.s32.totalorder %s19, 0
    %p82 = por %p80, %p81
    %p83 = scmp.ne.s32.totalorder %s69, %s70
    %p84 = scmp.eq.s32.totalorder %s20, 1
    %p85 = por %p83, %p84
    %p87 = scmp.ne.s32.totalorder %s70, %s86
    %p88 = scmp.eq.s32.totalorder %s20, 0
    %p89 = por %p87, %p88
    %s90 = ssub.s32 %s21, %s33
    %p91 = scmp.eq.s32.totalorder %s90, 0
    %s93 = sadd.s32 %s92, 1
    %s94 = scalar_select %p91, %s92, %s93
    %p97 = pneg %p91
    %p98 = scmp.eq.s32.totalorder %s14, 1
    %p99 = por %p97, %p98
    %p100 = scmp.ne.s32.totalorder %s92, %s95
    %p101 = scmp.eq.s32.totalorder %s14, 0
    %p102 = por %p100, %p101
    %p103 = scmp.ne.s32.totalorder %s92, %s95
    %p104 = scmp.eq.s32.totalorder %s19, 1
    %p105 = por %p103, %p104
    %p106 = scmp.ne.s32.totalorder %s95, %s96
    %p107 = scmp.eq.s32.totalorder %s19, 0
    %p108 = por %p106, %p107
    %p109 = scmp.ne.s32.totalorder %s95, %s96
    %p110 = scmp.eq.s32.totalorder %s20, 1
    %p111 = por %p109, %p110
    %p113 = scmp.ne.s32.totalorder %s96, %s112
    %p114 = scmp.eq.s32.totalorder %s20, 0
    %p115 = por %p113, %p114
    %s117 = sadd.s32 %s116, 1
    %p120 = scmp.eq.s32.totalorder %s14, 1
    %p121 = scmp.ne.s32.totalorder %s116, %s118
    %p122 = scmp.eq.s32.totalorder %s14, 0
    %p123 = por %p121, %p122
    %p124 = scmp.ne.s32.totalorder %s116, %s118
    %p125 = scmp.eq.s32.totalorder %s19, 1
    %p126 = por %p124, %p125
    %p127 = scmp.ne.s32.totalorder %s118, %s119
    %p128 = scmp.eq.s32.totalorder %s19, 0
    %p129 = por %p127, %p128
    %p130 = scmp.ne.s32.totalorder %s118, %s119
    %p131 = scmp.eq.s32.totalorder %s20, 1
    %p132 = por %p130, %p131
    %p134 = scmp.ne.s32.totalorder %s119, %s133
    %p135 = scmp.eq.s32.totalorder %s20, 0
    %p136 = por %p134, %p135
    %s137 = ssub.s32 %s21, %s33
    %s138 = ssub.s32 %s22, %s29
    %s139 = sor.u32 %s137, %s138
    %p140 = scmp.eq.s32.totalorder %s139, 0
    %s142 = sadd.s32 %s141, 1
    %s143 = scalar_select %p140, %s141, %s142
    %p146 = pneg %p140
    %p147 = scmp.eq.s32.totalorder %s14, 1
    %p148 = por %p146, %p147
    %p149 = scmp.ne.s32.totalorder %s141, %s144
    %p150 = scmp.eq.s32.totalorder %s14, 0
    %p151 = por %p149, %p150
    %p152 = scmp.ne.s32.totalorder %s141, %s144
    %p153 = scmp.eq.s32.totalorder %s19, 1
    %p154 = por %p152, %p153
    %p155 = scmp.ne.s32.totalorder %s144, %s145
    %p156 = scmp.eq.s32.totalorder %s19, 0
    %p157 = por %p155, %p156
    %p158 = scmp.ne.s32.totalorder %s144, %s145
    %p159 = scmp.eq.s32.totalorder %s20, 1
    %p160 = por %p158, %p159
    %p162 = scmp.ne.s32.totalorder %s145, %s161
    %p163 = scmp.eq.s32.totalorder %s20, 0
    %p164 = por %p162, %p163
    %s165 = ssub.s32 %s21, %s33
    %s166 = ssub.s32 %s22, %s29
    %s167 = sor.u32 %s165, %s166
    %p168 = scmp.eq.s32.totalorder %s167, 0
    %s170 = sadd.s32 %s169, 1
    %s171 = scalar_select %p168, %s169, %s170
    %p174 = pneg %p168
    %p175 = scmp.eq.s32.totalorder %s14, 1
    %p176 = por %p174, %p175
    %p177 = scmp.ne.s32.totalorder %s169, %s172
    %p178 = scmp.eq.s32.totalorder %s14, 0
    %p179 = por %p177, %p178
    %p180 = scmp.ne.s32.totalorder %s169, %s172
    %p181 = scmp.eq.s32.totalorder %s19, 1
    %p182 = por %p180, %p181
    %p183 = scmp.ne.s32.totalorder %s172, %s173
    %p184 = scmp.eq.s32.totalorder %s19, 0
    %p185 = por %p183, %p184
    %p186 = scmp.ne.s32.totalorder %s172, %s173
    %p187 = scmp.eq.s32.totalorder %s20, 1
    %p188 = por %p186, %p187
    %p190 = scmp.ne.s32.totalorder %s173, %s189
    %p191 = scmp.eq.s32.totalorder %s20, 0
    %p192 = por %p190, %p191
    %s193 = ssub.s32 %s21, %s33
    %s194 = ssub.s32 %s22, %s29
    %s195 = sor.u32 %s193, %s194
    %p196 = scmp.eq.s32.totalorder %s195, 0
    %s198 = sadd.s32 %s197, 1
    %s199 = scalar_select %p196, %s197, %s198
    %p202 = pneg %p196
    %p203 = scmp.eq.s32.totalorder %s14, 1
    %p204 = por %p202, %p203
    %p205 = scmp.ne.s32.totalorder %s197, %s200
    %p206 = scmp.eq.s32.totalorder %s14, 0
    %p207 = por %p205, %p206
    %p208 = scmp.ne.s32.totalorder %s197, %s200
    %p209 = scmp.eq.s32.totalorder %s19, 1
    %p210 = por %p208, %p209
    %p211 = scmp.ne.s32.totalorder %s200, %s201
    %p212 = scmp.eq.s32.totalorder %s19, 0
    %p213 = por %p211, %p212
    %p214 = scmp.ne.s32.totalorder %s200, %s201
    %p215 = scmp.eq.s32.totalorder %s20, 1
    %p216 = por %p214, %p215
    %p218 = scmp.ne.s32.totalorder %s201, %s217
    %p219 = scmp.eq.s32.totalorder %s20, 0
    %p220 = por %p218, %p219
    %s221 = ssub.s32 %s21, %s33
    %s222 = ssub.s32 %s22, %s29
    %s223 = sor.u32 %s221, %s222
    %p224 = scmp.eq.s32.totalorder %s223, 0
    %s226 = sadd.s32 %s225, 1
    %s227 = scalar_select %p224, %s225, %s226
    %p230 = pneg %p224
    %p231 = scmp.eq.s32.totalorder %s14, 1
    %p232 = por %p230, %p231
    %p233 = scmp.ne.s32.totalorder %s225, %s228
    %p234 = scmp.eq.s32.totalorder %s14, 0
    %p235 = por %p233, %p234
    %p236 = scmp.ne.s32.totalorder %s225, %s228
    %p237 = scmp.eq.s32.totalorder %s19, 1
    %p238 = por %p236, %p237
    %p239 = scmp.ne.s32.totalorder %s228, %s229
    %p240 = scmp.eq.s32.totalorder %s19, 0
    %p241 = por %p239, %p240
    %p242 = scmp.ne.s32.totalorder %s228, %s229
    %p243 = scmp.eq.s32.totalorder %s20, 1
    %p244 = por %p242, %p243
    %p246 = scmp.ne.s32.totalorder %s229, %s245
    %p247 = scmp.eq.s32.totalorder %s20, 0
    %p248 = por %p246, %p247
    %p249 = scmp.le.s32.totalorder 1, %s14
    %p250 = scmp.lt.s32.totalorder %s14, 3
    %p251 = pnand %p249, %p250
    %p252 = pneg %p251
    // Predicated region
    $region9: #{casrel_forward.1} parent=5 // pred_check
      _
    $region10: #{casrel_forward.1} parent=5 // pred_check_branch
      %254 = sbr.rel (%p251) target = $region12
    $region11: #{casrel_forward.1} parent=5 // pred_region
      %s255 = ssub.s32 %s14, 1
      // Predicated region
      $region13: #{casrel_forward.1} parent=11 // pred_check
        %p256 = pneg %p129
      $region14: #{casrel_forward.1} parent=11 // pred_check_branch
        %258 = sbr.rel (%p256) target = $region16
      $region15: #{casrel_forward.1} parent=11 // pred_region
        _
      $region16: #{casrel_forward.1} parent=11 // pred_fallthru
        _
    $region12: #{casrel_forward.1} parent=5 // pred_fallthru
      _
    %p259 = scmp.lt.s32.totalorder %s14, 2
    // Predicated region
    $region17: #{casrel_forward.1} parent=5 // pred_check
      %p260 = pneg %p259
    $region18: #{casrel_forward.1} parent=5 // pred_check_branch
      %262 = sbr.rel (%p260) target = $region20
    $region19: #{casrel_forward.1} parent=5 // pred_region
      // Predicated region
      $region21: #{casrel_forward.1} parent=19 // pred_check
        %p263 = pneg %p48
      $region22: #{casrel_forward.1} parent=19 // pred_check_branch
        %265 = sbr.rel (%p263) target = $region24
      $region23: #{casrel_forward.1} parent=19 // pred_region
        %p266 = scmp.lt.s32.totalorder %s21, 1
        %s267 = scalar_select %p266, %s21, 1
        %p268 = scmp.lt.s32.totalorder %s22, 0
        %s269 = scalar_select %p268, %s22, 0
        %s270 = sadd.s32 %s269, %s267
        %s271 = smul.addr %s270, 4
        %s272 = scalar_lea.vmem %s0, %s271
      $region24: #{casrel_forward.1} parent=19 // pred_fallthru
        _
      // Predicated region
      $region25: #{casrel_forward.1} parent=19 // pred_check
        %p273 = pneg %p76
      $region26: #{casrel_forward.1} parent=19 // pred_check_branch
        %275 = sbr.rel (%p273) target = $region28
      $region27: #{casrel_forward.1} parent=19 // pred_region
        %p276 = scmp.lt.s32.totalorder %s21, 1
        %s277 = scalar_select %p276, %s21, 1
        %p278 = scmp.lt.s32.totalorder %s22, 0
        %s279 = scalar_select %p278, %s22, 0
        %s280 = sadd.s32 %s279, %s277
        %s281 = smul.addr %s280, 8
        %s282 = scalar_lea.vmem %s1, %s281
      $region28: #{casrel_forward.1} parent=19 // pred_fallthru
        _
      // Predicated region
      $region29: #{casrel_forward.1} parent=19 // pred_check
        %p283 = pneg %p102
      $region30: #{casrel_forward.1} parent=19 // pred_check_branch
        %285 = sbr.rel (%p283) target = $region32
      $region31: #{casrel_forward.1} parent=19 // pred_region
        %p286 = scmp.lt.s32.totalorder %s21, 1
        %s287 = scalar_select %p286, %s21, 1
        %s288 = scalar_lea.vmem %s2, %s287
      $region32: #{casrel_forward.1} parent=19 // pred_fallthru
        _
    $region20: #{casrel_forward.1} parent=5 // pred_fallthru
      _
    %p289 = scmp.le.s32.totalorder 1, %s14
    %p290 = scmp.lt.s32.totalorder %s14, 3
    %p291 = pnand %p289, %p290
    %p292 = pneg %p291
    // Predicated region
    $region33: #{casrel_forward.1} parent=5 // pred_check
      _
    $region34: #{casrel_forward.1} parent=5 // pred_check_branch
      %294 = sbr.rel (%p291) target = $region36
    $region35: #{casrel_forward.1} parent=5 // pred_region
      %s295 = ssub.s32 %s14, 1
      %p296 = scmp.lt.s32.totalorder %s23, 1
      %s297 = scalar_select %p296, %s23, 1
      %p298 = scmp.lt.s32.totalorder %s24, 0
      %s299 = scalar_select %p298, %s24, 0
      %s300 = sadd.s32 %s299, %s297
      %s301 = smul.addr %s300, 4
      %s302 = scalar_lea.vmem %s0, %s301
      %p303 = pneg %p54
      %p304 = pneg %p51
      %p305 = scmp.lt.s32.totalorder %s23, 1
      %s306 = scalar_select %p305, %s23, 1
      %p307 = scmp.lt.s32.totalorder %s24, 0
      %s308 = scalar_select %p307, %s24, 0
      %s309 = sadd.s32 %s308, %s306
      %s310 = smul.addr %s309, 8
      %s311 = scalar_lea.vmem %s1, %s310
      %p312 = pneg %p82
      %p313 = pneg %p79
      %p314 = scmp.lt.s32.totalorder %s23, 1
      %s315 = scalar_select %p314, %s23, 1
      %s316 = scalar_lea.vmem %s2, %s315
      %p317 = pneg %p108
      %p318 = pneg %p105
      %p319 = pneg %p129
      %p320 = pneg %p126
      %p321 = pneg %p157
      %p322 = pneg %p154
      %p323 = scmp.lt.s32.totalorder %s23, 1
      %s324 = scalar_select %p323, %s23, 1
      %p325 = scmp.lt.s32.totalorder %s24, 0
      %s326 = scalar_select %p325, %s24, 0
      %s327 = sadd.s32 %s326, %s324
      %s328 = smul.addr %s327, 4
      %s329 = scalar_lea.vmem %s4, %s328
      %p330 = pneg %p185
      %p331 = pneg %p182
      %p332 = scmp.lt.s32.totalorder %s23, 1
      %s333 = scalar_select %p332, %s23, 1
      %p334 = scmp.lt.s32.totalorder %s24, 0
      %s335 = scalar_select %p334, %s24, 0
      %s336 = sadd.s32 %s335, %s333
      %s337 = smul.addr %s336, 4
      %s338 = scalar_lea.vmem %s5, %s337
      %p339 = pneg %p213
      %p340 = pneg %p210
      %p341 = scmp.lt.s32.totalorder %s23, 1
      %s342 = scalar_select %p341, %s23, 1
      %p343 = scmp.lt.s32.totalorder %s24, 0
      %s344 = scalar_select %p343, %s24, 0
      %s345 = sadd.s32 %s344, %s342
      %s346 = smul.addr %s345, 4
      %s347 = scalar_lea.vmem %s6, %s346
      %p348 = pneg %p241
      %p349 = pneg %p238
      %p350 = scmp.lt.s32.totalorder %s23, 1
      %s351 = scalar_select %p350, %s23, 1
      %p352 = scmp.lt.s32.totalorder %s24, 0
      %s353 = scalar_select %p352, %s24, 0
      %s354 = sadd.s32 %s353, %s351
      %s355 = smul.addr %s354, 4
      %s356 = scalar_lea.vmem %s7, %s355
      %p357 = scmp.lt.s32.totalorder %s23, 1
      %s358 = scalar_select %p357, %s23, 1
      %p359 = scmp.lt.s32.totalorder %s24, 0
      %s360 = scalar_select %p359, %s24, 0
      %s361 = sadd.s32 %s360, %s358
      %s362 = smul.addr %s361, 4
      %s363 = scalar_lea.vmem %s0, %s362
      %p364 = scmp.lt.s32.totalorder %s23, 1
      %s365 = scalar_select %p364, %s23, 1
      %p366 = scmp.lt.s32.totalorder %s24, 0
      %s367 = scalar_select %p366, %s24, 0
      %s368 = sadd.s32 %s367, %s365
      %s369 = smul.addr %s368, 8
      %s370 = scalar_lea.vmem %s1, %s369
      %p371 = scmp.lt.s32.totalorder %s23, 1
      %s372 = scalar_select %p371, %s23, 1
      %s373 = scalar_lea.vmem %s2, %s372
      %p374 = scmp.lt.s32.totalorder %s23, 1
      %s375 = scalar_select %p374, %s23, 1
      %p376 = scmp.lt.s32.totalorder %s24, 0
      %s377 = scalar_select %p376, %s24, 0
      %s378 = sadd.s32 %s377, %s375
      %s379 = smul.addr %s378, 4
      %s380 = scalar_lea.vmem %s4, %s379
      %p381 = scmp.lt.s32.totalorder %s23, 1
      %s382 = scalar_select %p381, %s23, 1
      %p383 = scmp.lt.s32.totalorder %s24, 0
      %s384 = scalar_select %p383, %s24, 0
      %s385 = sadd.s32 %s384, %s382
      %s386 = smul.addr %s385, 4
      %s387 = scalar_lea.vmem %s5, %s386
      %p388 = scmp.lt.s32.totalorder %s23, 1
      %s389 = scalar_select %p388, %s23, 1
      %p390 = scmp.lt.s32.totalorder %s24, 0
      %s391 = scalar_select %p390, %s24, 0
      %s392 = sadd.s32 %s391, %s389
      %s393 = smul.addr %s392, 4
      %s394 = scalar_lea.vmem %s6, %s393
      %p395 = scmp.lt.s32.totalorder %s23, 1
      %s396 = scalar_select %p395, %s23, 1
      %p397 = scmp.lt.s32.totalorder %s24, 0
      %s398 = scalar_select %p397, %s24, 0
      %s399 = sadd.s32 %s398, %s396
      %s400 = smul.addr %s399, 4
      %s401 = scalar_lea.vmem %s7, %s400
      %v403 = vld [vmem:[%s3] sm:$0xf]
      %v404 = vld [vmem:[%s3 + $0x4] sm:$0xf]
      %v405 = vld [vmem:[%s3 + $0x8] sm:$0xf]
      %v406 = vld [vmem:[%s3 + $0xc] sm:$0xf]
      %v407 = vld [vmem:[%s363] sm:$0xf]
      %v408 = vld [vmem:[%s373] sm:$0x1]
      %v410 = vlaneseq
      %v411 = vshrl.u32 %v410, 7
      %v412 = vsub.s32 0, %v411
      %v413 = vrot.slane %v408, %v412
      %v419 = vunpack.c.l.b16 %v403
      %v420 = vunpack.c.l.b16 %v404
      %v421 = vunpack.c.l.b16 %v405
      %v422 = vunpack.c.l.b16 %v406
      %v423 = vpack.c.b16 %v420, %v419
      %v424 = vpack.c.b16 %v422, %v421
      %vm427 = vcmask 261120
      %v429 = vsel %vm427, %v407, 0
      %431 = vmatprep.subr.bf16.mxu0 0
      %432 = vmatpush1.bf16.msra.mxu0 0
      %433 = vmatprep.subr.bf16.mxu0 0
      %434 = vmatpush1.bf16.msra.mxu0 0
      %435 = vmatprep.subr.bf16.mxu0 0
      %436 = vmatpush1.bf16.msra.mxu0 0
      %437 = vmatprep.subr.bf16.mxu0 0
      %438 = vmatpush1.bf16.msra.mxu0 0
      %439 = vmatprep.subr.bf16.mxu0 0
      %440 = vmatpush1.bf16.msra.mxu0 0
      %441 = vmatprep.subr.bf16.mxu0 0
      %442 = vmatpush1.bf16.msra.mxu0 0
      %443 = vmatprep.subr.bf16.mxu0 0
      %444 = vmatpush1.bf16.msra.mxu0 %v424
      %445 = vmatprep.subr.bf16.mxu0 0
      %446 = vmatpush1.bf16.msra.mxu0 %v423
      %447 = vmatprep.subr.bf16.mxu0 0
      %448 = vmatpush2.bf16.msra.mxu0 0
      %449 = vmatprep.subr.bf16.mxu0 0
      %450 = vmatpush2.bf16.msra.mxu0 0
      %451 = vmatprep.subr.bf16.mxu0 0
      %452 = vmatpush2.bf16.msra.mxu0 0
      %453 = vmatprep.subr.bf16.mxu0 0
      %454 = vmatpush2.bf16.msra.mxu0 0
      %455 = vmatprep.subr.bf16.mxu0 0
      %456 = vmatpush2.bf16.msra.mxu0 0
      %457 = vmatprep.subr.bf16.mxu0 0
      %458 = vmatpush2.bf16.msra.mxu0 0
      %459 = vmatprep.subr.bf16.mxu0 0
      %460 = vmatpush2.bf16.msra.mxu0 0
      %461 = vmatprep.subr.bf16.mxu0 0
      %462 = vmatpush2.bf16.msra.mxu0 0
      %463 = vmatprep.mubr.bf16.mxu0 0
      %464 = vmatmul.mubr.bf16.gmra.mxu0 %v429
      %v465 = vpop.f32.mrf.mxu0
      %v466 = vadd.f32 %v413, %v465
      %v467 = vpop.f32.mrf.mxu0
      %v468 = vpop.f32.mrf.mxu0
      %v469 = vpop.f32.mrf.mxu0
      %470 = vdwg.mxu0
      %v471 = vxor.u32 %v466, 2147483648
      %v472 = vmul.f32 %v471, 1.442695
      %v473 = vpow.pop %v472
      %v474 = vadd.f32 %v473, 1.0
      %v475 = vrcp.pop %v474
      %v476 = vmul.f32 1.0, %v475
      %v477 = vld [vmem:[%s370] sm:$0xff]
      %479 = vset.pattern.permute.xlu0 0
      %480 = vperm.xlu0 %479, %v477
      %v481 = vpop.permute.xlu0 %480
      %v483 = vmul.f32 %v476, %v481
      %v484 = vpack.c.bf16 %v483, %v483
      %vm485 = vcmask 3072
      %486 = vst.msk [vmem:[%s380] sm:$0xf] %vm485, %v484
      %v488 = vunpack.c.l.b16 %v484
      %v489 = vpack.c.b16 %v488, %v488
      %490 = vrot.lane.b32.xlu0 %v489, 127
      %v491 = vpop.permute.xlu0 %490
      %493 = vst.msk [vmem:[%s387] sm:$0xf] %vm485, %v491
      %494 = vrot.lane.b32.xlu0 %v489, 126
      %v495 = vpop.permute.xlu0 %494
      %vm497 = vcmask 19456
      %498 = vst.msk [vmem:[%s394] sm:$0xf] %vm497, %v495
      %499 = vrot.lane.b32.xlu0 %v489, 123
      %v500 = vpop.permute.xlu0 %499
      %502 = vst.msk [vmem:[%s401] sm:$0xf] %vm497, %v500
      %p503 = scmp.lt.s32.totalorder %s23, 1
      %s504 = scalar_select %p503, %s23, 1
      %p505 = scmp.lt.s32.totalorder %s24, 0
      %s506 = scalar_select %p505, %s24, 0
      %s507 = sadd.s32 %s506, %s504
      %s508 = smul.addr %s507, 4
      %s509 = scalar_lea.vmem %s4, %s508
      %p510 = scmp.lt.s32.totalorder %s23, 1
      %s511 = scalar_select %p510, %s23, 1
      %p512 = scmp.lt.s32.totalorder %s24, 0
      %s513 = scalar_select %p512, %s24, 0
      %s514 = sadd.s32 %s513, %s511
      %s515 = smul.addr %s514, 4
      %s516 = scalar_lea.vmem %s5, %s515
      %p517 = scmp.lt.s32.totalorder %s23, 1
      %s518 = scalar_select %p517, %s23, 1
      %p519 = scmp.lt.s32.totalorder %s24, 0
      %s520 = scalar_select %p519, %s24, 0
      %s521 = sadd.s32 %s520, %s518
      %s522 = smul.addr %s521, 4
      %s523 = scalar_lea.vmem %s6, %s522
      %p524 = scmp.lt.s32.totalorder %s23, 1
      %s525 = scalar_select %p524, %s23, 1
      %p526 = scmp.lt.s32.totalorder %s24, 0
      %s527 = scalar_select %p526, %s24, 0
      %s528 = sadd.s32 %s527, %s525
      %s529 = smul.addr %s528, 4
      %s530 = scalar_lea.vmem %s7, %s529
      // Predicated region
      $region37: #{casrel_forward.1} parent=35 // pred_check
        %p531 = pneg %p154
      $region38: #{casrel_forward.1} parent=35 // pred_check_branch
        %533 = sbr.rel (%p531) target = $region40
      $region39: #{casrel_forward.1} parent=35 // pred_region
        _
      $region40: #{casrel_forward.1} parent=35 // pred_fallthru
        _
      // Predicated region
      $region41: #{casrel_forward.1} parent=35 // pred_check
        %p534 = pneg %p182
      $region42: #{casrel_forward.1} parent=35 // pred_check_branch
        %536 = sbr.rel (%p534) target = $region44
      $region43: #{casrel_forward.1} parent=35 // pred_region
        _
      $region44: #{casrel_forward.1} parent=35 // pred_fallthru
        _
      // Predicated region
      $region45: #{casrel_forward.1} parent=35 // pred_check
        %p537 = pneg %p210
      $region46: #{casrel_forward.1} parent=35 // pred_check_branch
        %539 = sbr.rel (%p537) target = $region48
      $region47: #{casrel_forward.1} parent=35 // pred_region
        _
      $region48: #{casrel_forward.1} parent=35 // pred_fallthru
        _
      // Predicated region
      $region49: #{casrel_forward.1} parent=35 // pred_check
        %p540 = pneg %p238
      $region50: #{casrel_forward.1} parent=35 // pred_check_branch
        %542 = sbr.rel (%p540) target = $region52
      $region51: #{casrel_forward.1} parent=35 // pred_region
        _
      $region52: #{casrel_forward.1} parent=35 // pred_fallthru
        _
    $region36: #{casrel_forward.1} parent=5 // pred_fallthru
      _
    %p543 = scmp.le.s32.totalorder 2, %s14
    // Predicated region
    $region53: #{casrel_forward.1} parent=5 // pred_check
      %p544 = pneg %p543
    $region54: #{casrel_forward.1} parent=5 // pred_check_branch
      %546 = sbr.rel (%p544) target = $region56
    $region55: #{casrel_forward.1} parent=5 // pred_region
      %s547 = ssub.s32 %s14, 2
      // Predicated region
      $region57: #{casrel_forward.1} parent=55 // pred_check
        %p548 = pneg %p160
      $region58: #{casrel_forward.1} parent=55 // pred_check_branch
        %550 = sbr.rel (%p548) target = $region60
      $region59: #{casrel_forward.1} parent=55 // pred_region
        %p551 = scmp.lt.s32.totalorder %s25, 1
        %s552 = scalar_select %p551, %s25, 1
        %p553 = scmp.lt.s32.totalorder %s26, 0
        %s554 = scalar_select %p553, %s26, 0
        %s555 = sadd.s32 %s554, %s552
        %s556 = smul.addr %s555, 4
        %s557 = scalar_lea.vmem %s4, %s556
      $region60: #{casrel_forward.1} parent=55 // pred_fallthru
        _
      // Predicated region
      $region61: #{casrel_forward.1} parent=55 // pred_check
        %p558 = pneg %p188
      $region62: #{casrel_forward.1} parent=55 // pred_check_branch
        %560 = sbr.rel (%p558) target = $region64
      $region63: #{casrel_forward.1} parent=55 // pred_region
        %p561 = scmp.lt.s32.totalorder %s25, 1
        %s562 = scalar_select %p561, %s25, 1
        %p563 = scmp.lt.s32.totalorder %s26, 0
        %s564 = scalar_select %p563, %s26, 0
        %s565 = sadd.s32 %s564, %s562
        %s566 = smul.addr %s565, 4
        %s567 = scalar_lea.vmem %s5, %s566
      $region64: #{casrel_forward.1} parent=55 // pred_fallthru
        _
      // Predicated region
      $region65: #{casrel_forward.1} parent=55 // pred_check
        %p568 = pneg %p216
      $region66: #{casrel_forward.1} parent=55 // pred_check_branch
        %570 = sbr.rel (%p568) target = $region68
      $region67: #{casrel_forward.1} parent=55 // pred_region
        %p571 = scmp.lt.s32.totalorder %s25, 1
        %s572 = scalar_select %p571, %s25, 1
        %p573 = scmp.lt.s32.totalorder %s26, 0
        %s574 = scalar_select %p573, %s26, 0
        %s575 = sadd.s32 %s574, %s572
        %s576 = smul.addr %s575, 4
        %s577 = scalar_lea.vmem %s6, %s576
      $region68: #{casrel_forward.1} parent=55 // pred_fallthru
        _
      // Predicated region
      $region69: #{casrel_forward.1} parent=55 // pred_check
        %p578 = pneg %p244
      $region70: #{casrel_forward.1} parent=55 // pred_check_branch
        %580 = sbr.rel (%p578) target = $region72
      $region71: #{casrel_forward.1} parent=55 // pred_region
        %p581 = scmp.lt.s32.totalorder %s25, 1
        %s582 = scalar_select %p581, %s25, 1
        %p583 = scmp.lt.s32.totalorder %s26, 0
        %s584 = scalar_select %p583, %s26, 0
        %s585 = sadd.s32 %s584, %s582
        %s586 = smul.addr %s585, 4
        %s587 = scalar_lea.vmem %s7, %s586
      $region72: #{casrel_forward.1} parent=55 // pred_fallthru
        _
    $region56: #{casrel_forward.1} parent=5 // pred_fallthru
      _
  $region6: #{casrel_forward.1} parent=0 // loop_footer
    %s18 = sadd.s32 1, %s14
  $region7: #{casrel_forward.1} parent=0 // loop_footer_branch
    %13 = sbr.rel target = $region3
  $region8: #{casrel_forward.1} parent=0 // loop_exit
    _

</llo_original>
